<compile_context>
chip_gen: v6e
topology: v6e:2x2x1
jax: 0.10.0
libtpu: 0.0.40
codegen_flags: <defaults>
</compile_context>

<pallas_src>
import jax
import jax.numpy as jnp
from jax.experimental import pallas as pl
from jax.experimental.pallas import tpu as pltpu

_MIB = 1024 * 1024
_HEADROOM = 2 * _MIB


def _round_up(x, m):
    return ((x + m - 1) // m) * m


def _pad_dim(d, gran):
    # Keep genuinely small feature dims unpadded (full-dim blocks are legal on
    # TPU and avoid inflating FLOPs / HBM traffic); lane-align the large ones.
    return d if d <= gran else _round_up(d, gran)


def _pad2(a, rows, cols):
    return jnp.pad(a, ((0, rows - a.shape[0]), (0, cols - a.shape[1])))


def _tpu_vmem_budget():
    """Generation-aware (vmem_limit_bytes, is_small_vmem_chip)."""
    cap = 128 * _MIB
    try:
        cap = int(getattr(pltpu.get_tpu_info(), "vmem_capacity_bytes", cap))
    except Exception:  # interpret mode / very old JAX: keep the safe default.
        pass
    if cap <= 64 * _MIB:         # v7x-class: 64 MiB physical per TensorCore.
        return 52 * _MIB, True   # never claim the whole physical VMEM.
    return 100 * _MIB, False     # v5e / v6e: 128 MiB physical.


# ----------------------------------------------------------------------------
# Kernels
# ----------------------------------------------------------------------------
def _mlp_resident_kernel(x_ref, w1_ref, b1_ref, w2_ref, b2_ref, o_ref):
    # fc1: MXU matmul with f32 accumulation; bias add + ReLU in f32.
    h = jnp.dot(x_ref[...], w1_ref[...], preferred_element_type=jnp.float32)
    h = jnp.maximum(h + b1_ref[...], 0.0)
    # fc2: downcast the f32 activation to the fc2 MXU input dtype
    # (no-op for f32 weights, bf16/fp8 when requested).
    y = jnp.dot(h.astype(w2_ref.dtype), w2_ref[...],
                preferred_element_type=jnp.float32)
    o_ref[...] = jnp.maximum(y + b2_ref[...], 0.0).astype(o_ref.dtype)


def _mlp_htiled_kernel(x_ref, w1_ref, b1_ref, w2_ref, b2_ref, o_ref, acc_ref):
    # Grid = (batch tile i [parallel], H-reduction tile k [arbitrary]).
    k = pl.program_id(1)

    @pl.when(k == 0)
    def _():
        acc_ref[...] = jnp.zeros_like(acc_ref)

    h = jnp.dot(x_ref[...], w1_ref[...], preferred_element_type=jnp.float32)
    h = jnp.maximum(h + b1_ref[...], 0.0)
    acc_ref[...] += jnp.dot(h.astype(w2_ref.dtype), w2_ref[...],
                            preferred_element_type=jnp.float32)

    @pl.when(k == pl.num_programs(1) - 1)
    def _():
        o_ref[...] = jnp.maximum(acc_ref[...] + b2_ref[...], 0.0
                                 ).astype(o_ref.dtype)


# ----------------------------------------------------------------------------
# One-time parameter preparation (hoisted out of the per-call path)
# ----------------------------------------------------------------------------
def prepare_mlp_params(w1, b1, w2, b2, *, mxu_dtype=jnp.bfloat16,
                       lane_gran=128):
    """Pad + cast the MLP parameters once.

    bf16 is the recommended MXU input dtype on every TPU generation
    (bf16-native MXU, f32 accumulation).  Pass jnp.float32 for exact f32, or
    an fp8 dtype (e.g. jnp.float8_e4m3fn) on v7x to halve weight VMEM/DMA.
    """
    w1 = jnp.asarray(w1)
    w2 = jnp.asarray(w2)
    Cin, H = w1.shape
    H2, O = w2.shape
    assert H2 == H, "fc1 output dim must match fc2 input dim"
    if mxu_dtype is None:
        mm_dtype = jnp.dtype(jnp.result_type(w1.dtype, w2.dtype))
    else:
        mm_dtype = jnp.dtype(mxu_dtype)
    # TODO(synk): use a 256 granularity on v6e/v7x (2x256x256 MXU) when the
    # dims are large; 128 is always legal and is kept as the portable default.
    Cin_p = _pad_dim(Cin, lane_gran)
    H_p = _pad_dim(H, lane_gran)
    O_p = _pad_dim(O, lane_gran)
    b1 = jnp.asarray(b1, jnp.float32).reshape(1, H)
    b2 = jnp.asarray(b2, jnp.float32).reshape(1, O)
    return {
        "w1": _pad2(w1, Cin_p, H_p).astype(mm_dtype),
        "b1": _pad2(b1, 1, H_p),
        "w2": _pad2(w2, H_p, O_p).astype(mm_dtype),
        "b2": _pad2(b2, 1, O_p),
        "dims": (Cin, H, O),
        "pdims": (Cin_p, H_p, O_p),
        "mm_dtype": mm_dtype,
    }


# ----------------------------------------------------------------------------
# Forward call
# ----------------------------------------------------------------------------
def mlp_pallas(x, params, *, out_dtype=None, tb=None, th=None,
               force_tiled=False):
    """Fused MLP forward.  `params` comes from prepare_mlp_params()."""
    orig_shape = x.shape
    if x.ndim != 2:
        x = x.reshape(-1, orig_shape[-1])
    B, Cin = x.shape

    Cin0, H0, O0 = params["dims"]
    assert Cin == Cin0, f"x feature dim {Cin} != fc1 in_features {Cin0}"
    Cin_p, H_p, O_p = params["pdims"]
    mm_dtype = params["mm_dtype"]
    mm_bytes = jnp.dtype(mm_dtype).itemsize
    out_dtype = jnp.dtype(out_dtype) if out_dtype is not None else x.dtype
    out_bytes = out_dtype.itemsize

    vmem_limit, is_small_vmem = _tpu_vmem_budget()
    w_bytes_1x = (Cin_p * H_p + H_p * O_p) * mm_bytes + (H_p + O_p) * 4

    def resident_step_bytes(t):
        # Double-buffered x/out tiles + materialized intermediates
        # (f32 h, its MXU-dtype cast copy for fc2, and the f32 y tile).
        return (2 * t * Cin_p * mm_bytes
                + 2 * t * O_p * out_bytes
                + t * H_p * (4 + mm_bytes)
                + t * O_p * 4)

    # Resident path must fit even if the weights end up double-buffered
    # (no-pipeline_mode fallback); otherwise stream weight tiles.
    use_tiled = force_tiled or (
        2 * w_bytes_1x + resident_step_bytes(8) + _HEADROOM > vmem_limit)

    if not use_tiled:
        # ------------------------------ resident-weight path ---------------
        if tb is None:
            budget = vmem_limit - 2 * w_bytes_1x - _HEADROOM
            b8 = max(_round_up(B, 8), 8)
            tb = 8
            for cand in (1024, 512, 256, 128, 64, 32, 16, 8):
                if cand <= b8 and resident_step_bytes(cand) <= budget:
                    tb = cand
                    break
            # Only force >= 2 grid steps where the split pays off: v7x-class
            # chips shard the "parallel" axis across 2 TensorCores; on
            # single-TC v5e/v6e only bother for large batches (real DMA
            # pipelining to expose), otherwise keep one big MXU-friendly tile.
            if is_small_vmem or b8 >= 256:
                while tb > 8 and _round_up(B, tb) // tb < 2:
                    tb //= 2
        tb = _round_up(int(tb), 8)
        B_p = _round_up(max(B, 1), tb)
        grid = (B_p // tb,)
        x_p = _pad2(x, B_p, Cin_p).astype(mm_dtype)

        cost = pl.CostEstimate(
            flops=2 * B_p * (Cin_p * H_p + H_p * O_p),
            transcendentals=0,
            bytes_accessed=(B_p * Cin_p * mm_bytes + w_bytes_1x
                            + B_p * O_p * out_bytes))

        def call(resident_kwargs, weight_mult):
            vmem_needed = (weight_mult * w_bytes_1x
                           + resident_step_bytes(tb) + _HEADROOM)
            grid_spec = pltpu.PrefetchScalarGridSpec(
                num_scalar_prefetch=0,
                grid=grid,
                in_specs=[
                    pl.BlockSpec((tb, Cin_p), lambda i: (i, 0)),             # x
                    pl.BlockSpec((Cin_p, H_p), lambda i: (0, 0),
                                 **resident_kwargs),                         # w1
                    pl.BlockSpec((1, H_p), lambda i: (0, 0),
                                 **resident_kwargs),                         # b1
                    pl.BlockSpec((H_p, O_p), lambda i: (0, 0),
                                 **resident_kwargs),                         # w2
                    pl.BlockSpec((1, O_p), lambda i: (0, 0),
                                 **resident_kwargs),                         # b2
                ],
                out_specs=pl.BlockSpec((tb, O_p), lambda i: (i, 0)),
            )
            return pl.pallas_call(
                _mlp_resident_kernel,
                out_shape=jax.ShapeDtypeStruct((B_p, O_p), out_dtype),
                grid_spec=grid_spec,
                compiler_params=pltpu.CompilerParams(
                    dimension_semantics=("parallel",),
                    vmem_limit_bytes=int(min(vmem_limit,
                                             max(vmem_needed, 16 * _MIB)))),
                cost_estimate=cost,
            )(x_p, params["w1"], params["b1"], params["w2"], params["b2"])

        fallback_errors = (TypeError, ValueError, NotImplementedError,
                           getattr(pltpu, "LoweringException", TypeError))
        try:
            # Constant-index weights are never re-fetched; single-buffer them
            # so the second copy's VMEM is free for larger x/out tiles.
            out_p = call({"pipeline_mode": pl.Buffered(1)}, 1)
        except fallback_errors:
            # JAX without per-BlockSpec pipeline_mode: weights get
            # double-buffered.  tb was already sized for that worst case, so
            # only the vmem limit is re-derived here.
            out_p = call({}, 2)

    else:
        # ------------------------------ H-tiled streaming path -------------
        def tiled_step_bytes(t, tt):
            return (2 * t * Cin_p * mm_bytes        # x tile (double-buffered)
                    + 2 * Cin_p * tt * mm_bytes     # w1 tile
                    + 2 * tt * 4                    # b1 tile
                    + 2 * tt * O_p * mm_bytes       # w2 tile
                    + 2 * O_p * 4                   # b2 (constant)
                    + 2 * t * O_p * out_bytes       # out tile
                    + t * O_p * 4                   # f32 accumulator scratch
                    + t * tt * (4 + mm_bytes)       # f32 h + MXU-dtype copy
                    + t * O_p * 4)                  # partial f32 y

        if tb is not None:
            tb_cands = [_round_up(int(tb), 8)]
        else:
            b8 = max(_round_up(B, 8), 8)
            tb_cands = [c for c in (512, 256, 128, 64, 32, 16, 8)
                        if c <= b8] or [8]
        if th is not None and H_p % int(th) == 0:
            th_cands = [int(th)]
        else:
            th_cands = [c for c in (1024, 512, 256, 128)
                        if c <= H_p and H_p % c == 0] or [H_p]

        pick = None
        # Larger batch tile first: each weight tile is re-streamed once per
        # batch tile, so tb directly divides total weight HBM traffic.
        for t in tb_cands:
            for tt in th_cands:
                if tiled_step_bytes(t, tt) + _HEADROOM <= vmem_limit:
                    pick = (t, tt)
                    break
            if pick is not None:
                break
        if pick is None:
            # TODO(synk): also tile Cin and O (extra grid axes) for MLPs whose
            # single (Cin_p x 128) or (128 x O_p) weight slabs overflow VMEM.
            pick = (tb_cands[-1], th_cands[-1])
        tb_t, th_t = pick

        B_p = _round_up(max(B, 1), tb_t)
        grid = (B_p // tb_t, H_p // th_t)
        x_p = _pad2(x, B_p, Cin_p).astype(mm_dtype)

        cost = pl.CostEstimate(
            flops=2 * B_p * (Cin_p * H_p + H_p * O_p),
            transcendentals=0,
            bytes_accessed=(B_p * Cin_p * mm_bytes
                            + grid[0] * w_bytes_1x      # weights per batch tile
                            + B_p * O_p * out_bytes))

        vmem_needed = tiled_step_bytes(tb_t, th_t) + _HEADROOM
        grid_spec = pltpu.PrefetchScalarGridSpec(
            num_scalar_prefetch=0,
            grid=grid,
            in_specs=[
                pl.BlockSpec((tb_t, Cin_p), lambda i, k: (i, 0)),   # x
                pl.BlockSpec((Cin_p, th_t), lambda i, k: (0, k)),   # w1 tile
                pl.BlockSpec((1, th_t), lambda i, k: (0, k)),       # b1 tile
                pl.BlockSpec((th_t, O_p), lambda i, k: (k, 0)),     # w2 tile
                pl.BlockSpec((1, O_p), lambda i, k: (0, 0)),        # b2
            ],
            out_specs=pl.BlockSpec((tb_t, O_p), lambda i, k: (i, 0)),
            scratch_shapes=[pltpu.VMEM((tb_t, O_p), jnp.float32)],
        )
        out_p = pl.pallas_call(
            _mlp_htiled_kernel,
            out_shape=jax.ShapeDtypeStruct((B_p, O_p), out_dtype),
            grid_spec=grid_spec,
            compiler_params=pltpu.CompilerParams(
                dimension_semantics=("parallel", "arbitrary"),
                vmem_limit_bytes=int(min(vmem_limit,
                                         max(vmem_needed, 16 * _MIB)))),
            cost_estimate=cost,
        )(x_p, params["w1"], params["b1"], params["w2"], params["b2"])

    out = out_p[:B, :O0]
    return out.reshape(orig_shape[:-1] + (O0,))


def mlp_forward(x, w1, b1, w2, b2, *, mxu_dtype=jnp.bfloat16, out_dtype=None):
    """One-shot convenience wrapper (pads/casts weights on every call; for
    repeated calls use prepare_mlp_params() once + mlp_pallas)."""
    return mlp_pallas(x, prepare_mlp_params(w1, b1, w2, b2,
                                            mxu_dtype=mxu_dtype),
                      out_dtype=out_dtype)


def mlp_ref(x, w1, b1, w2, b2):
    h = jnp.maximum(x @ w1 + jnp.asarray(b1).reshape(1, -1), 0.0)
    return jnp.maximum(h @ w2 + jnp.asarray(b2).reshape(1, -1), 0.0)


if __name__ == "__main__":
    # Small shapes implied by the module: x is (batch, in_channels).
    batch, in_channels, interim_size, output_size = 64, 32, 64, 16

    key = jax.random.PRNGKey(0)
    k1, k2, k3, k4, k5 = jax.random.split(key, 5)

    # Deterministic nn.Linear-style init: U(-1/sqrt(fan_in), 1/sqrt(fan_in)).
    bound1 = 1.0 / (in_channels ** 0.5)
    bound2 = 1.0 / (interim_size ** 0.5)
    x = jax.random.normal(k1, (batch, in_channels), dtype=jnp.float32)
    w1 = jax.random.uniform(k2, (in_channels, interim_size), jnp.float32,
                            -bound1, bound1)
    b1 = jax.random.uniform(k3, (interim_size,), jnp.float32, -bound1, bound1)
    w2 = jax.random.uniform(k4, (interim_size, output_size), jnp.float32,
                            -bound2, bound2)
    b2 = jax.random.uniform(k5, (output_size,), jnp.float32, -bound2, bound2)

    ref = mlp_ref(x, w1, b1, w2, b2)

    # 1) f32 MXU path, resident weights (strict check); params prepared once.
    params_f32 = prepare_mlp_params(w1, b1, w2, b2, mxu_dtype=jnp.float32)
    out = jax.block_until_ready(mlp_pallas(x, params_f32))
    assert out.shape == (batch, output_size)
    assert jnp.allclose(out, ref, atol=1e-5, rtol=1e-5)

    # 2) bf16 MXU path (recommended default on all generations), f32 accum.
    params_bf16 = prepare_mlp_params(w1, b1, w2, b2)  # mxu_dtype=bf16 default
    out_bf16 = jax.block_until_ready(mlp_pallas(x, params_bf16))
    assert out_bf16.shape == (batch, output_size)
    assert jnp.allclose(out_bf16, ref, atol=5e-2, rtol=5e-2)

    # 3) H-tiled streaming path (what large interim sizes use), forced at a
    #    small shape with a 128-row H tile to exercise the f32 accumulator
    #    and the "arbitrary" reduction axis.
    interim_big = 256
    k6, k7 = jax.random.split(k5)
    bound2b = 1.0 / (interim_big ** 0.5)
    w1b = jax.random.uniform(k6, (in_channels, interim_big), jnp.float32,
                             -bound1, bound1)
    w2b = jax.random.uniform(k7, (interim_big, output_size), jnp.float32,
                             -bound2b, bound2b)
    b1b = jnp.zeros((interim_big,), jnp.float32)
    b2b = jnp.zeros((output_size,), jnp.float32)
    ref_b = mlp_ref(x, w1b, b1b, w2b, b2b)
    params_b = prepare_mlp_params(w1b, b1b, w2b, b2b, mxu_dtype=jnp.float32)
    out_b = jax.block_until_ready(
        mlp_pallas(x, params_b, force_tiled=True, th=128))
    assert out_b.shape == (batch, output_size)
    assert jnp.allclose(out_b, ref_b, atol=1e-5, rtol=1e-5)

    print("KERNEL_OK")
</pallas_src>

<mosaic_0001>
module attributes {stable_mosaic.version = 11 : i64} {
  func.func @_mlp_resident_kernel(%arg0: i32, %arg1: memref<64x32xf32, #tpu.memory_space<vmem>>, %arg2: memref<32x64xf32, #tpu.memory_space<vmem>>, %arg3: memref<1x64xf32, #tpu.memory_space<vmem>>, %arg4: memref<64x16xf32, #tpu.memory_space<vmem>>, %arg5: memref<1x16xf32, #tpu.memory_space<vmem>>, %arg6: memref<64x16xf32, #tpu.memory_space<vmem>>) attributes {dimension_semantics = [#tpu.dimension_semantics<parallel>], iteration_bounds = array<i64: 1>, scalar_prefetch = 0 : i64, scratch_operands = 0 : i64, tpu.core_type = #tpu.core_type<tc>, window_params = [{transform_indices = @transform_0, window_bounds = array<i64: 64, 32>}, {pipeline_mode = #tpu.pipeline_mode<synchronous>, transform_indices = @transform_1, window_bounds = array<i64: 32, 64>}, {pipeline_mode = #tpu.pipeline_mode<synchronous>, transform_indices = @transform_2, window_bounds = array<i64: 1, 64>}, {pipeline_mode = #tpu.pipeline_mode<synchronous>, transform_indices = @transform_3, window_bounds = array<i64: 64, 16>}, {pipeline_mode = #tpu.pipeline_mode<synchronous>, transform_indices = @transform_4, window_bounds = array<i64: 1, 16>}, {transform_indices = @transform_5, window_bounds = array<i64: 64, 16>}]} {
    %c0 = arith.constant 0 : index
    %c0_0 = arith.constant 0 : index
    %0 = vector.load %arg1[%c0, %c0_0] : memref<64x32xf32, #tpu.memory_space<vmem>>, vector<64x32xf32>
    %c0_1 = arith.constant 0 : index
    %c0_2 = arith.constant 0 : index
    %1 = vector.load %arg2[%c0_1, %c0_2] : memref<32x64xf32, #tpu.memory_space<vmem>>, vector<32x64xf32>
    %cst = arith.constant dense<0.000000e+00> : vector<64x64xf32>
    %2 = tpu.matmul %0, %1, %cst {dimension_numbers = #tpu.dot_dimension_numbers<[1], [0], [0], [1], [0, 0, 1, 1], [], []>} : vector<64x32xf32>, vector<32x64xf32>, vector<64x64xf32> -> vector<64x64xf32>
    %c0_3 = arith.constant 0 : index
    %c0_4 = arith.constant 0 : index
    %3 = vector.load %arg3[%c0_3, %c0_4] : memref<1x64xf32, #tpu.memory_space<vmem>>, vector<1x64xf32>
    %4 = vector.broadcast %3 : vector<1x64xf32> to vector<64x64xf32>
    %5 = arith.addf %2, %4 : vector<64x64xf32>
    %cst_5 = arith.constant 0.000000e+00 : f32
    %6 = vector.broadcast %cst_5 : f32 to vector<64x64xf32>
    %7 = arith.maximumf %5, %6 : vector<64x64xf32>
    %c0_6 = arith.constant 0 : index
    %c0_7 = arith.constant 0 : index
    %8 = vector.load %arg4[%c0_6, %c0_7] : memref<64x16xf32, #tpu.memory_space<vmem>>, vector<64x16xf32>
    %cst_8 = arith.constant dense<0.000000e+00> : vector<64x16xf32>
    %9 = tpu.matmul %7, %8, %cst_8 {dimension_numbers = #tpu.dot_dimension_numbers<[1], [0], [0], [1], [0, 0, 1, 1], [], []>} : vector<64x64xf32>, vector<64x16xf32>, vector<64x16xf32> -> vector<64x16xf32>
    %c0_9 = arith.constant 0 : index
    %c0_10 = arith.constant 0 : index
    %10 = vector.load %arg5[%c0_9, %c0_10] : memref<1x16xf32, #tpu.memory_space<vmem>>, vector<1x16xf32>
    %11 = vector.broadcast %10 : vector<1x16xf32> to vector<64x16xf32>
    %12 = arith.addf %9, %11 : vector<64x16xf32>
    %cst_11 = arith.constant 0.000000e+00 : f32
    %13 = vector.broadcast %cst_11 : f32 to vector<64x16xf32>
    %14 = arith.maximumf %12, %13 : vector<64x16xf32>
    %c0_12 = arith.constant 0 : index
    %c0_13 = arith.constant 0 : index
    %15 = vector.load %arg6[%c0_12, %c0_13] : memref<64x16xf32, #tpu.memory_space<vmem>>, vector<64x16xf32>
    tpu.vector_store %arg6[%c0_12, %c0_13], %14 {strides = array<i32>} : memref<64x16xf32, #tpu.memory_space<vmem>>, vector<64x16xf32>,
    return
  }
  func.func @transform_0(%arg0: i32) -> (i32, i32) {
    %c0_i32 = arith.constant 0 : i32
    %c0_i32_0 = arith.constant 0 : i32
    return %arg0, %c0_i32 : i32, i32
  }
  func.func @transform_1(%arg0: i32) -> (i32, i32) {
    %c0_i32 = arith.constant 0 : i32
    %c0_i32_0 = arith.constant 0 : i32
    %c0_i32_1 = arith.constant 0 : i32
    return %c0_i32, %c0_i32_0 : i32, i32
  }
  func.func @transform_2(%arg0: i32) -> (i32, i32) {
    %c0_i32 = arith.constant 0 : i32
    %c0_i32_0 = arith.constant 0 : i32
    %c0_i32_1 = arith.constant 0 : i32
    return %c0_i32, %c0_i32_0 : i32, i32
  }
  func.func @transform_3(%arg0: i32) -> (i32, i32) {
    %c0_i32 = arith.constant 0 : i32
    %c0_i32_0 = arith.constant 0 : i32
    %c0_i32_1 = arith.constant 0 : i32
    return %c0_i32, %c0_i32_0 : i32, i32
  }
  func.func @transform_4(%arg0: i32) -> (i32, i32) {
    %c0_i32 = arith.constant 0 : i32
    %c0_i32_0 = arith.constant 0 : i32
    %c0_i32_1 = arith.constant 0 : i32
    return %c0_i32, %c0_i32_0 : i32, i32
  }
  func.func @transform_5(%arg0: i32) -> (i32, i32) {
    %c0_i32 = arith.constant 0 : i32
    %c0_i32_0 = arith.constant 0 : i32
    return %arg0, %c0_i32 : i32, i32
  }
}

</mosaic_0001>

<llo_original>
// kernel: tpu_custom_call.1
$region0: #{tpu_custom_call.1}
  #allocation0 [shape = 'u32[]', space=smem, size = 0x4, offset = 0x4, fixed_abs, tag = 'smem constant byte address 0x4 - core index']
  #allocation1 [shape = 'u32[144,128]{1,0:T(1,128)}', space=vmem, size = 0x12000, scoped, tag = 'internal scratch']
  %s0 = inlined_call_operand.vmem [shape: f32[64,32], index: 0, kind: input, shape index: {}]
  %s1 = inlined_call_operand.vmem [shape: f32[32,64], index: 1, kind: input, shape index: {}]
  %s2 = inlined_call_operand.vmem [shape: f32[1,64], index: 2, kind: input, shape index: {}]
  %s3 = inlined_call_operand.vmem [shape: f32[64,16], index: 3, kind: input, shape index: {}]
  %s4 = inlined_call_operand.vmem [shape: f32[1,16], index: 4, kind: input, shape index: {}]
  %s5 = inlined_call_operand.vmem [shape: f32[64,16], index: 5, kind: output, shape index: {}]
  %s6 = sld [smem:[#allocation0]]
  $region30: #{tpu_custom_call.1} parent=0
    _
  %s8 = ssub.s32 1, %s6
  %s9 = scalar_select 0, %s8, %s6
  // Predicated region
  $region2: #{tpu_custom_call.1} parent=0 // pred_check
    _
  $region3: #{tpu_custom_call.1} parent=0 // pred_check_branch
    %11 = sbr.rel (0) target = $region5
  $region4: #{tpu_custom_call.1} parent=0 // pred_region
    _
  $region5: #{tpu_custom_call.1} parent=0 // pred_fallthru
    _
  // Predicated region
  $region6: #{tpu_custom_call.1} parent=0 // pred_check
    _
  $region7: #{tpu_custom_call.1} parent=0 // pred_check_branch
    %13 = sbr.rel (0) target = $region9
  $region8: #{tpu_custom_call.1} parent=0 // pred_region
    _
  $region9: #{tpu_custom_call.1} parent=0 // pred_fallthru
    _
  // Predicated region
  $region10: #{tpu_custom_call.1} parent=0 // pred_check
    _
  $region11: #{tpu_custom_call.1} parent=0 // pred_check_branch
    %15 = sbr.rel (0) target = $region13
  $region12: #{tpu_custom_call.1} parent=0 // pred_region
    _
  $region13: #{tpu_custom_call.1} parent=0 // pred_fallthru
    _
  // Predicated region
  $region14: #{tpu_custom_call.1} parent=0 // pred_check
    _
  $region15: #{tpu_custom_call.1} parent=0 // pred_check_branch
    %17 = sbr.rel (0) target = $region17
  $region16: #{tpu_custom_call.1} parent=0 // pred_region
    _
  $region17: #{tpu_custom_call.1} parent=0 // pred_fallthru
    _
  // Predicated region
  $region18: #{tpu_custom_call.1} parent=0 // pred_check
    _
  $region19: #{tpu_custom_call.1} parent=0 // pred_check_branch
    %19 = sbr.rel (0) target = $region21
  $region20: #{tpu_custom_call.1} parent=0 // pred_region
    _
  $region21: #{tpu_custom_call.1} parent=0 // pred_fallthru
    _
  %v20 = vld [vmem:[%s0] sm:$0xff]
  %v21 = vld [vmem:[%s0 + $0x8] sm:$0xff]
  %v22 = vld [vmem:[%s0 + $0x10] sm:$0xff]
  %v23 = vld [vmem:[%s0 + $0x18] sm:$0xff]
  %v24 = vld [vmem:[%s0 + $0x20] sm:$0xff]
  %v25 = vld [vmem:[%s0 + $0x28] sm:$0xff]
  %v26 = vld [vmem:[%s0 + $0x30] sm:$0xff]
  %v27 = vld [vmem:[%s0 + $0x38] sm:$0xff]
  %v28 = vld [vmem:[%s1] sm:$0xff]
  %v29 = vld [vmem:[%s1 + $0x8] sm:$0xff]
  %v30 = vld [vmem:[%s1 + $0x10] sm:$0xff]
  %v31 = vld [vmem:[%s1 + $0x18] sm:$0xff]
  %v32 = vld [vmem:[%s2] sm:$0x1]
  %v34 = vlaneseq
  %v35 = vshrl.u32 %v34, 7
  %v36 = vsub.s32 0, %v35
  %v37 = vrot.slane %v32, %v36
  %vm39 = vcmask 261120
  %v41 = vsel %vm39, %v20, 0
  %v44 = vsel %vm39, %v21, 0
  %v47 = vsel %vm39, %v22, 0
  %v50 = vsel %vm39, %v23, 0
  %v53 = vsel %vm39, %v24, 0
  %v56 = vsel %vm39, %v25, 0
  %v59 = vsel %vm39, %v26, 0
  %v62 = vsel %vm39, %v27, 0
  %64 = vmatprep.subr.mxu0 0.0
  %65 = vmatpush1.msra.mxu0 0.0
  %66 = vmatprep.subr.mxu0 0.0
  %67 = vmatpush1.msra.mxu0 0.0
  %68 = vmatprep.subr.mxu0 0.0
  %69 = vmatpush1.msra.mxu0 0.0
  %70 = vmatprep.subr.mxu0 0.0
  %71 = vmatpush1.msra.mxu0 0.0
  %72 = vmatprep.subr.mxu0 0.0
  %73 = vmatpush1.msra.mxu0 0.0
  %74 = vmatprep.subr.mxu0 0.0
  %75 = vmatpush1.msra.mxu0 0.0
  %76 = vmatprep.subr.mxu0 0.0
  %77 = vmatpush1.msra.mxu0 0.0
  %78 = vmatprep.subr.mxu0 0.0
  %79 = vmatpush1.msra.mxu0 0.0
  %80 = vmatprep.subr.mxu0 0.0
  %81 = vmatpush1.msra.mxu0 0.0
  %82 = vmatprep.subr.mxu0 0.0
  %83 = vmatpush1.msra.mxu0 0.0
  %84 = vmatprep.subr.mxu0 0.0
  %85 = vmatpush1.msra.mxu0 0.0
  %86 = vmatprep.subr.mxu0 0.0
  %87 = vmatpush1.msra.mxu0 0.0
  %88 = vmatprep.subr.mxu0 0.0
  %89 = vmatpush1.msra.mxu0 %v31
  %90 = vmatprep.subr.mxu0 0.0
  %91 = vmatpush1.msra.mxu0 %v30
  %92 = vmatprep.subr.mxu0 0.0
  %93 = vmatpush1.msra.mxu0 %v29
  %94 = vmatprep.subr.mxu0 0.0
  %95 = vmatpush1.msra.mxu0 %v28
  %96 = vmatprep.subr.mxu0 0.0
  %97 = vmatpush2.msra.mxu0 0.0
  %98 = vmatprep.subr.mxu0 0.0
  %99 = vmatpush2.msra.mxu0 0.0
  %100 = vmatprep.subr.mxu0 0.0
  %101 = vmatpush2.msra.mxu0 0.0
  %102 = vmatprep.subr.mxu0 0.0
  %103 = vmatpush2.msra.mxu0 0.0
  %104 = vmatprep.subr.mxu0 0.0
  %105 = vmatpush2.msra.mxu0 0.0
  %106 = vmatprep.subr.mxu0 0.0
  %107 = vmatpush2.msra.mxu0 0.0
  %108 = vmatprep.subr.mxu0 0.0
  %109 = vmatpush2.msra.mxu0 0.0
  %110 = vmatprep.subr.mxu0 0.0
  %111 = vmatpush2.msra.mxu0 0.0
  %112 = vmatprep.subr.mxu0 0.0
  %113 = vmatpush2.msra.mxu0 0.0
  %114 = vmatprep.subr.mxu0 0.0
  %115 = vmatpush2.msra.mxu0 0.0
  %116 = vmatprep.subr.mxu0 0.0
  %117 = vmatpush2.msra.mxu0 0.0
  %118 = vmatprep.subr.mxu0 0.0
  %119 = vmatpush2.msra.mxu0 0.0
  %120 = vmatprep.subr.mxu0 0.0
  %121 = vmatpush2.msra.mxu0 0.0
  %122 = vmatprep.subr.mxu0 0.0
  %123 = vmatpush2.msra.mxu0 0.0
  %124 = vmatprep.subr.mxu0 0.0
  %125 = vmatpush2.msra.mxu0 0.0
  %126 = vmatprep.subr.mxu0 0.0
  %127 = vmatpush2.msra.mxu0 0.0
  %128 = vmatprep.mubr.f32.mxu0 0.0
  %129 = vmatmul.mubr.f32.gmra.mxu0 %v41
  %v130 = vpop.f32.mrf.mxu0
  %v131 = vadd.f32 %v37, %v130
  %v132 = vpop.f32.mrf.mxu0
  %133 = vmatprep.mubr.f32.mxu0 0.0
  %134 = vmatmul.mubr.f32.gmra.mxu0 %v44
  %v135 = vpop.f32.mrf.mxu0
  %v136 = vadd.f32 %v37, %v135
  %v137 = vpop.f32.mrf.mxu0
  %138 = vmatprep.mubr.f32.mxu0 0.0
  %139 = vmatmul.mubr.f32.gmra.mxu0 %v47
  %v140 = vpop.f32.mrf.mxu0
  %v141 = vadd.f32 %v37, %v140
  %v142 = vpop.f32.mrf.mxu0
  %143 = vmatprep.mubr.f32.mxu0 0.0
  %144 = vmatmul.mubr.f32.gmra.mxu0 %v50
  %v145 = vpop.f32.mrf.mxu0
  %v146 = vadd.f32 %v37, %v145
  %v147 = vpop.f32.mrf.mxu0
  %148 = vmatprep.mubr.f32.mxu0 0.0
  %149 = vmatmul.mubr.f32.gmra.mxu0 %v53
  %v150 = vpop.f32.mrf.mxu0
  %v151 = vadd.f32 %v37, %v150
  %v152 = vpop.f32.mrf.mxu0
  %153 = vmatprep.mubr.f32.mxu0 0.0
  %154 = vmatmul.mubr.f32.gmra.mxu0 %v56
  %v155 = vpop.f32.mrf.mxu0
  %v156 = vadd.f32 %v37, %v155
  %v157 = vpop.f32.mrf.mxu0
  %158 = vmatprep.mubr.f32.mxu0 0.0
  %159 = vmatmul.mubr.f32.gmra.mxu0 %v59
  %v160 = vpop.f32.mrf.mxu0
  %v161 = vadd.f32 %v37, %v160
  %v162 = vpop.f32.mrf.mxu0
  %163 = vmatprep.mubr.f32.mxu0 0.0
  %164 = vmatmul.mubr.f32.gmra.mxu0 %v62
  %v165 = vpop.f32.mrf.mxu0
  %v166 = vadd.f32 %v37, %v165
  %v167 = vpop.f32.mrf.mxu0
  %168 = vdwg.mxu0
  %v169 = vmax.f32 %v131, 0.0
  %v170 = vmax.f32 %v136, 0.0
  %v171 = vmax.f32 %v141, 0.0
  %v172 = vmax.f32 %v146, 0.0
  %v173 = vmax.f32 %v151, 0.0
  %v174 = vmax.f32 %v156, 0.0
  %v175 = vmax.f32 %v161, 0.0
  %v176 = vmax.f32 %v166, 0.0
  %v177 = vld [vmem:[%s3] sm:$0xff]
  %v178 = vld [vmem:[%s3 + $0x8] sm:$0xff]
  %v179 = vld [vmem:[%s3 + $0x10] sm:$0xff]
  %v180 = vld [vmem:[%s3 + $0x18] sm:$0xff]
  %v181 = vld [vmem:[%s3 + $0x20] sm:$0xff]
  %v182 = vld [vmem:[%s3 + $0x28] sm:$0xff]
  %v183 = vld [vmem:[%s3 + $0x30] sm:$0xff]
  %v184 = vld [vmem:[%s3 + $0x38] sm:$0xff]
  %v185 = vld [vmem:[%s4] sm:$0x1]
  %v187 = vlaneseq
  %v188 = vshrl.u32 %v187, 7
  %v189 = vsub.s32 0, %v188
  %v190 = vrot.slane %v185, %v189
  %vm192 = vcmask 523264
  %v194 = vsel %vm192, %v169, 0
  %v197 = vsel %vm192, %v170, 0
  %v200 = vsel %vm192, %v171, 0
  %v203 = vsel %vm192, %v172, 0
  %v206 = vsel %vm192, %v173, 0
  %v209 = vsel %vm192, %v174, 0
  %v212 = vsel %vm192, %v175, 0
  %v215 = vsel %vm192, %v176, 0
  %217 = vmatprep.subr.mxu0 0.0
  %218 = vmatpush1.msra.mxu0 0.0
  %219 = vmatprep.subr.mxu0 0.0
  %220 = vmatpush1.msra.mxu0 0.0
  %221 = vmatprep.subr.mxu0 0.0
  %222 = vmatpush1.msra.mxu0 0.0
  %223 = vmatprep.subr.mxu0 0.0
  %224 = vmatpush1.msra.mxu0 0.0
  %225 = vmatprep.subr.mxu0 0.0
  %226 = vmatpush1.msra.mxu0 0.0
  %227 = vmatprep.subr.mxu0 0.0
  %228 = vmatpush1.msra.mxu0 0.0
  %229 = vmatprep.subr.mxu0 0.0
  %230 = vmatpush1.msra.mxu0 0.0
  %231 = vmatprep.subr.mxu0 0.0
  %232 = vmatpush1.msra.mxu0 0.0
  %233 = vmatprep.subr.mxu0 0.0
  %234 = vmatpush1.msra.mxu0 %v184
  %235 = vmatprep.subr.mxu0 0.0
  %236 = vmatpush1.msra.mxu0 %v183
  %237 = vmatprep.subr.mxu0 0.0
  %238 = vmatpush1.msra.mxu0 %v182
  %239 = vmatprep.subr.mxu0 0.0
  %240 = vmatpush1.msra.mxu0 %v181
  %241 = vmatprep.subr.mxu0 0.0
  %242 = vmatpush1.msra.mxu0 %v180
  %243 = vmatprep.subr.mxu0 0.0
  %244 = vmatpush1.msra.mxu0 %v179
  %245 = vmatprep.subr.mxu0 0.0
  %246 = vmatpush1.msra.mxu0 %v178
  %247 = vmatprep.subr.mxu0 0.0
  %248 = vmatpush1.msra.mxu0 %v177
  %249 = vmatprep.subr.mxu0 0.0
  %250 = vmatpush2.msra.mxu0 0.0
  %251 = vmatprep.subr.mxu0 0.0
  %252 = vmatpush2.msra.mxu0 0.0
  %253 = vmatprep.subr.mxu0 0.0
  %254 = vmatpush2.msra.mxu0 0.0
  %255 = vmatprep.subr.mxu0 0.0
  %256 = vmatpush2.msra.mxu0 0.0
  %257 = vmatprep.subr.mxu0 0.0
  %258 = vmatpush2.msra.mxu0 0.0
  %259 = vmatprep.subr.mxu0 0.0
  %260 = vmatpush2.msra.mxu0 0.0
  %261 = vmatprep.subr.mxu0 0.0
  %262 = vmatpush2.msra.mxu0 0.0
  %263 = vmatprep.subr.mxu0 0.0
  %264 = vmatpush2.msra.mxu0 0.0
  %265 = vmatprep.subr.mxu0 0.0
  %266 = vmatpush2.msra.mxu0 0.0
  %267 = vmatprep.subr.mxu0 0.0
  %268 = vmatpush2.msra.mxu0 0.0
  %269 = vmatprep.subr.mxu0 0.0
  %270 = vmatpush2.msra.mxu0 0.0
  %271 = vmatprep.subr.mxu0 0.0
  %272 = vmatpush2.msra.mxu0 0.0
  %273 = vmatprep.subr.mxu0 0.0
  %274 = vmatpush2.msra.mxu0 0.0
  %275 = vmatprep.subr.mxu0 0.0
  %276 = vmatpush2.msra.mxu0 0.0
  %277 = vmatprep.subr.mxu0 0.0
  %278 = vmatpush2.msra.mxu0 0.0
  %279 = vmatprep.subr.mxu0 0.0
  %280 = vmatpush2.msra.mxu0 0.0
  %281 = vmatprep.mubr.f32.mxu0 0.0
  %282 = vmatmul.mubr.f32.gmra.mxu0 %v194
  %v283 = vpop.f32.mrf.mxu0
  %v284 = vadd.f32 %v190, %v283
  %v285 = vpop.f32.mrf.mxu0
  %286 = vmatprep.mubr.f32.mxu0 0.0
  %287 = vmatmul.mubr.f32.gmra.mxu0 %v197
  %v288 = vpop.f32.mrf.mxu0
  %v289 = vadd.f32 %v190, %v288
  %v290 = vpop.f32.mrf.mxu0
  %291 = vmatprep.mubr.f32.mxu0 0.0
  %292 = vmatmul.mubr.f32.gmra.mxu0 %v200
  %v293 = vpop.f32.mrf.mxu0
  %v294 = vadd.f32 %v190, %v293
  %v295 = vpop.f32.mrf.mxu0
  %296 = vmatprep.mubr.f32.mxu0 0.0
  %297 = vmatmul.mubr.f32.gmra.mxu0 %v203
  %v298 = vpop.f32.mrf.mxu0
  %v299 = vadd.f32 %v190, %v298
  %v300 = vpop.f32.mrf.mxu0
  %301 = vmatprep.mubr.f32.mxu0 0.0
  %302 = vmatmul.mubr.f32.gmra.mxu0 %v206
  %v303 = vpop.f32.mrf.mxu0
  %v304 = vadd.f32 %v190, %v303
  %v305 = vpop.f32.mrf.mxu0
  %306 = vmatprep.mubr.f32.mxu0 0.0
  %307 = vmatmul.mubr.f32.gmra.mxu0 %v209
  %v308 = vpop.f32.mrf.mxu0
  %v309 = vadd.f32 %v190, %v308
  %v310 = vpop.f32.mrf.mxu0
  %311 = vmatprep.mubr.f32.mxu0 0.0
  %312 = vmatmul.mubr.f32.gmra.mxu0 %v212
  %v313 = vpop.f32.mrf.mxu0
  %v314 = vadd.f32 %v190, %v313
  %v315 = vpop.f32.mrf.mxu0
  %316 = vmatprep.mubr.f32.mxu0 0.0
  %317 = vmatmul.mubr.f32.gmra.mxu0 %v215
  %v318 = vpop.f32.mrf.mxu0
  %v319 = vadd.f32 %v190, %v318
  %v320 = vpop.f32.mrf.mxu0
  %321 = vdwg.mxu0
  %v322 = vmax.f32 %v284, 0.0
  %v323 = vmax.f32 %v289, 0.0
  %v324 = vmax.f32 %v294, 0.0
  %v325 = vmax.f32 %v299, 0.0
  %v326 = vmax.f32 %v304, 0.0
  %v327 = vmax.f32 %v309, 0.0
  %v328 = vmax.f32 %v314, 0.0
  %v329 = vmax.f32 %v319, 0.0
  %vm330 = vcmask 130048
  %331 = vst.msk [vmem:[%s5] sm:$0xff] %vm330, %v322
  %332 = vst.msk [vmem:[%s5 + $0x8] sm:$0xff] %vm330, %v323
  %333 = vst.msk [vmem:[%s5 + $0x10] sm:$0xff] %vm330, %v324
  %334 = vst.msk [vmem:[%s5 + $0x18] sm:$0xff] %vm330, %v325
  %335 = vst.msk [vmem:[%s5 + $0x20] sm:$0xff] %vm330, %v326
  %336 = vst.msk [vmem:[%s5 + $0x28] sm:$0xff] %vm330, %v327
  %337 = vst.msk [vmem:[%s5 + $0x30] sm:$0xff] %vm330, %v328
  %338 = vst.msk [vmem:[%s5 + $0x38] sm:$0xff] %vm330, %v329
  // Predicated region
  $region22: #{tpu_custom_call.1} parent=0 // pred_check
    _
  $region23: #{tpu_custom_call.1} parent=0 // pred_check_branch
    %340 = sbr.rel (0) target = $region25
  $region24: #{tpu_custom_call.1} parent=0 // pred_region
    _
  $region25: #{tpu_custom_call.1} parent=0 // pred_fallthru
    _
  // Predicated region
  $region26: #{tpu_custom_call.1} parent=0 // pred_check
    _
  $region27: #{tpu_custom_call.1} parent=0 // pred_check_branch
    %342 = sbr.rel (0) target = $region29
  $region28: #{tpu_custom_call.1} parent=0 // pred_region
    _
  $region29: #{tpu_custom_call.1} parent=0 // pred_fallthru
    _

</llo_original>
